<compile_context>
chip_gen: v5e
topology: v5e:2x2
jax: 0.10.0
libtpu: 0.0.40
codegen_flags: <defaults>
</compile_context>

<pallas_src>
import functools

import jax
import jax.numpy as jnp
from jax.experimental import pallas as pl
from jax.experimental.pallas import tpu as pltpu


def _lora_kernel(x_ref, wd_ref, wu_ref, o_ref):
    # x_ref:  (tm, in_features)     tile of flattened tokens
    # wd_ref: (in_features, rank)   down-proj weight (transposed), VMEM-resident
    # wu_ref: (rank, out_features)  up-proj weight (transposed),  VMEM-resident
    # o_ref:  (tm, out_features)
    compute_dtype = wd_ref.dtype
    x = x_ref[...].astype(compute_dtype)                      # hidden_states.to(dtype)
    down = jnp.dot(x, wd_ref[...], preferred_element_type=jnp.float32)
    up = jnp.dot(down.astype(compute_dtype), wu_ref[...],
                 preferred_element_type=jnp.float32)
    o_ref[...] = up.astype(o_ref.dtype)                       # .to(orig_dtype)


def _round_up(x, mult):
    return ((x + mult - 1) // mult) * mult


def _pick_tile(m, in_f, out_f_p, x_itemsize, w_itemsize, rank):
    """M tile that amortizes per-step overhead / fills the MXU while keeping
    total VMEM (double-buffered x + out tiles, resident weights, f32 `down`
    intermediate) under ~48 MiB -- safe on v7x (64 MiB) and v5e/v6e."""
    sublane = 8 * max(1, 4 // x_itemsize)     # 8 (f32) / 16 (bf16) / 32 (int8)
    if m <= 256:
        return _round_up(m, sublane)
    budget = 48 * 1024 * 1024
    w_bytes = 2 * (in_f * rank + rank * out_f_p) * w_itemsize   # conservative
    per_row = 2 * in_f * x_itemsize + 2 * out_f_p * x_itemsize + 4 * rank
    tm = (budget - w_bytes) // per_row
    tm = max(256, min(1024, (tm // 256) * 256))
    # Keep >= ~4 blocks so v7x's two TensorCores both get work.
    while tm > 256 and m // tm < 4:
        tm //= 2
    return tm


@functools.partial(jax.jit, static_argnames=("network_alpha",))
def lora_linear(hidden_states, w_down, w_up, *, network_alpha=None):
    """LoRA forward: up(down(x)), dtype-cast semantics matching the module.

    hidden_states: (..., in_features), any float dtype (orig_dtype preserved)
    w_down:        (rank, in_features)   as in nn.Linear(in_features, rank)
    w_up:          (out_features, rank)  as in nn.Linear(rank, out_features)
    network_alpha: optional float; scales the output by network_alpha / rank.
    """
    orig_dtype = hidden_states.dtype
    in_features = hidden_states.shape[-1]
    rank = w_down.shape[0]
    out_features = w_up.shape[0]

    lead_shape = hidden_states.shape[:-1]
    x2d = hidden_states.reshape(-1, in_features)
    m = x2d.shape[0]

    # Fold the optional network_alpha/rank scaling into the up weight (free).
    if network_alpha is not None:
        w_up = w_up * (network_alpha / rank)

    # Lane-dense output: pad out_features up to a multiple of 128.
    out_p = _round_up(out_features, 128)
    if out_p != out_features:
        w_up = jnp.pad(w_up, ((0, out_p - out_features), (0, 0)))

    tm = _pick_tile(m, in_features, out_p,
                    jnp.dtype(orig_dtype).itemsize,
                    jnp.dtype(w_down.dtype).itemsize, rank)
    m_p = _round_up(m, tm)
    if m_p != m:
        x2d = jnp.pad(x2d, ((0, m_p - m), (0, 0)))

    wd_t = w_down.T          # (in_features, rank)
    wu_t = w_up.T            # (rank, out_p)

    out2d = pl.pallas_call(
        _lora_kernel,
        out_shape=jax.ShapeDtypeStruct((m_p, out_p), orig_dtype),
        grid_spec=pltpu.PrefetchScalarGridSpec(
            num_scalar_prefetch=0,
            grid=(m_p // tm,),
            in_specs=[
                pl.BlockSpec((tm, in_features), lambda i: (i, 0)),
                pl.BlockSpec((in_features, rank), lambda i: (0, 0)),
                pl.BlockSpec((rank, out_p), lambda i: (0, 0)),
            ],
            out_specs=pl.BlockSpec((tm, out_p), lambda i: (i, 0)),
        ),
        compiler_params=pltpu.CompilerParams(
            dimension_semantics=("parallel",),
            vmem_limit_bytes=64 << 20,
        ),
    )(x2d, wd_t, wu_t)

    out2d = out2d[:m, :out_features]
    return out2d.reshape(*lead_shape, out_features)


if __name__ == "__main__":
    # Small shapes consistent with the module.
    batch, seq = 2, 8
    in_features, out_features, rank = 32, 32, 8

    key = jax.random.PRNGKey(0)
    k_x, k_down, k_up, k_x2 = jax.random.split(key, 4)

    # Module init: down.weight ~ N(0, 1/rank), up.weight = zeros.
    w_down = (jax.random.normal(k_down, (rank, in_features), jnp.float32)
              * (1.0 / rank))
    w_up_init = jnp.zeros((out_features, rank), jnp.float32)
    # Non-trivial up weight so the numerics are actually exercised.
    w_up = jax.random.normal(k_up, (out_features, rank), jnp.float32) * 0.1

    hidden_states = jax.random.normal(
        k_x, (batch, seq, in_features), dtype=jnp.float32)

    def ref_fn(x, wd, wu, alpha=None):
        y = (x.astype(wd.dtype) @ wd.T) @ wu.T
        if alpha is not None:
            y = y * (alpha / wd.shape[0])
        return y.astype(x.dtype)

    # 1) module-default init (up == 0) -> zeros out.
    out0 = jax.block_until_ready(lora_linear(hidden_states, w_down, w_up_init))
    assert out0.shape == (batch, seq, out_features), out0.shape
    assert out0.dtype == hidden_states.dtype, out0.dtype
    assert jnp.allclose(out0, ref_fn(hidden_states, w_down, w_up_init),
                        atol=1e-5, rtol=1e-5)

    # 2) non-trivial up weight.
    out1 = jax.block_until_ready(lora_linear(hidden_states, w_down, w_up))
    assert jnp.allclose(out1, ref_fn(hidden_states, w_down, w_up),
                        atol=1e-5, rtol=1e-5)

    # 3) ragged token count (exercises the M-padding path, no divisibility assert).
    x_ragged = jax.random.normal(k_x2, (batch, 5, in_features), jnp.float32)
    out2 = jax.block_until_ready(lora_linear(x_ragged, w_down, w_up))
    assert out2.shape == (batch, 5, out_features), out2.shape
    assert jnp.allclose(out2, ref_fn(x_ragged, w_down, w_up),
                        atol=1e-5, rtol=1e-5)

    # 4) optional network_alpha scaling (not in the base module; default None).
    out3 = jax.block_until_ready(
        lora_linear(hidden_states, w_down, w_up, network_alpha=16.0))
    assert jnp.allclose(out3, ref_fn(hidden_states, w_down, w_up, alpha=16.0),
                        atol=1e-5, rtol=1e-5)

    print("KERNEL_OK")
</pallas_src>

<mosaic_0001>
module attributes {stable_mosaic.version = 11 : i64} {
  func.func @_lora_kernel(%arg0: i32, %arg1: memref<16x32xf32, #tpu.memory_space<vmem>>, %arg2: memref<32x8xf32, #tpu.memory_space<vmem>>, %arg3: memref<8x128xf32, #tpu.memory_space<vmem>>, %arg4: memref<16x128xf32, #tpu.memory_space<vmem>>) attributes {dimension_semantics = [#tpu.dimension_semantics<parallel>], iteration_bounds = array<i64: 1>, scalar_prefetch = 0 : i64, scratch_operands = 0 : i64, tpu.core_type = #tpu.core_type<tc>, window_params = [{transform_indices = @transform_0, window_bounds = array<i64: 16, 32>}, {pipeline_mode = #tpu.pipeline_mode<synchronous>, transform_indices = @transform_1, window_bounds = array<i64: 32, 8>}, {pipeline_mode = #tpu.pipeline_mode<synchronous>, transform_indices = @transform_2, window_bounds = array<i64: 8, 128>}, {transform_indices = @transform_3, window_bounds = array<i64: 16, 128>}]} {
    %c0 = arith.constant 0 : index
    %c0_0 = arith.constant 0 : index
    %0 = vector.load %arg1[%c0, %c0_0] : memref<16x32xf32, #tpu.memory_space<vmem>>, vector<16x32xf32>
    %c0_1 = arith.constant 0 : index
    %c0_2 = arith.constant 0 : index
    %1 = vector.load %arg2[%c0_1, %c0_2] : memref<32x8xf32, #tpu.memory_space<vmem>>, vector<32x8xf32>
    %cst = arith.constant dense<0.000000e+00> : vector<16x8xf32>
    %2 = tpu.matmul %0, %1, %cst {dimension_numbers = #tpu.dot_dimension_numbers<[1], [0], [0], [1], [0, 0, 1, 1], [], []>} : vector<16x32xf32>, vector<32x8xf32>, vector<16x8xf32> -> vector<16x8xf32>
    %c0_3 = arith.constant 0 : index
    %c0_4 = arith.constant 0 : index
    %3 = vector.load %arg3[%c0_3, %c0_4] : memref<8x128xf32, #tpu.memory_space<vmem>>, vector<8x128xf32>
    %cst_5 = arith.constant dense<0.000000e+00> : vector<16x128xf32>
    %4 = tpu.matmul %2, %3, %cst_5 {dimension_numbers = #tpu.dot_dimension_numbers<[1], [0], [0], [1], [0, 0, 1, 1], [], []>} : vector<16x8xf32>, vector<8x128xf32>, vector<16x128xf32> -> vector<16x128xf32>
    %c0_6 = arith.constant 0 : index
    %c0_7 = arith.constant 0 : index
    %5 = vector.load %arg4[%c0_6, %c0_7] : memref<16x128xf32, #tpu.memory_space<vmem>>, vector<16x128xf32>
    tpu.vector_store %arg4[%c0_6, %c0_7], %4 {strides = array<i32>} : memref<16x128xf32, #tpu.memory_space<vmem>>, vector<16x128xf32>,
    return
  }
  func.func @transform_0(%arg0: i32) -> (i32, i32) {
    %c0_i32 = arith.constant 0 : i32
    %c0_i32_0 = arith.constant 0 : i32
    return %arg0, %c0_i32 : i32, i32
  }
  func.func @transform_1(%arg0: i32) -> (i32, i32) {
    %c0_i32 = arith.constant 0 : i32
    %c0_i32_0 = arith.constant 0 : i32
    %c0_i32_1 = arith.constant 0 : i32
    return %c0_i32, %c0_i32_0 : i32, i32
  }
  func.func @transform_2(%arg0: i32) -> (i32, i32) {
    %c0_i32 = arith.constant 0 : i32
    %c0_i32_0 = arith.constant 0 : i32
    %c0_i32_1 = arith.constant 0 : i32
    return %c0_i32, %c0_i32_0 : i32, i32
  }
  func.func @transform_3(%arg0: i32) -> (i32, i32) {
    %c0_i32 = arith.constant 0 : i32
    %c0_i32_0 = arith.constant 0 : i32
    return %arg0, %c0_i32 : i32, i32
  }
}

</mosaic_0001>

<llo_original>
// kernel: lora_linear.1
$region0: #{lora_linear.1}
  #allocation0 [shape = 'u32[]', space=smem, size = 0x4, offset = 0x4, fixed_abs, tag = 'smem constant byte address 0x4 - core index']
  #allocation1 [shape = 'u32[72,128]{1,0:T(1,128)}', space=vmem, size = 0x9000, scoped, tag = 'internal scratch']
  %s0 = inlined_call_operand.vmem [shape: f32[16,32], index: 0, kind: input, shape index: {}]
  %s1 = inlined_call_operand.vmem [shape: f32[32,8], index: 1, kind: input, shape index: {}]
  %s2 = inlined_call_operand.vmem [shape: f32[8,128], index: 2, kind: input, shape index: {}]
  %s3 = inlined_call_operand.vmem [shape: f32[16,128], index: 3, kind: output, shape index: {}]
  %s4 = sld [smem:[#allocation0]]
  $region22: #{lora_linear.1} parent=0
    _
  %s6 = ssub.s32 1, %s4
  %s7 = scalar_select 0, %s6, %s4
  // Predicated region
  $region2: #{lora_linear.1} parent=0 // pred_check
    _
  $region3: #{lora_linear.1} parent=0 // pred_check_branch
    %9 = sbr.rel (0) target = $region5
  $region4: #{lora_linear.1} parent=0 // pred_region
    _
  $region5: #{lora_linear.1} parent=0 // pred_fallthru
    _
  // Predicated region
  $region6: #{lora_linear.1} parent=0 // pred_check
    _
  $region7: #{lora_linear.1} parent=0 // pred_check_branch
    %11 = sbr.rel (0) target = $region9
  $region8: #{lora_linear.1} parent=0 // pred_region
    _
  $region9: #{lora_linear.1} parent=0 // pred_fallthru
    _
  // Predicated region
  $region10: #{lora_linear.1} parent=0 // pred_check
    _
  $region11: #{lora_linear.1} parent=0 // pred_check_branch
    %13 = sbr.rel (0) target = $region13
  $region12: #{lora_linear.1} parent=0 // pred_region
    _
  $region13: #{lora_linear.1} parent=0 // pred_fallthru
    _
  %v14 = vld [vmem:[%s0] sm:$0xff]
  %v15 = vld [vmem:[%s0 + $0x8] sm:$0xff]
  %v16 = vld [vmem:[%s1] sm:$0xff]
  %v17 = vld [vmem:[%s1 + $0x8] sm:$0xff]
  %v18 = vld [vmem:[%s1 + $0x10] sm:$0xff]
  %v19 = vld [vmem:[%s1 + $0x18] sm:$0xff]
  %vm20 = vcmask 261120
  %v22 = vsel %vm20, %v14, 0
  %v25 = vsel %vm20, %v15, 0
  %27 = vmatpush.msra.mxu0 0.0
  %28 = vmatpush.msra.mxu0 0.0
  %29 = vmatpush.msra.mxu0 0.0
  %30 = vmatpush.msra.mxu0 0.0
  %31 = vmatpush.msra.mxu0 0.0
  %32 = vmatpush.msra.mxu0 0.0
  %33 = vmatpush.msra.mxu0 0.0
  %34 = vmatpush.msra.mxu0 0.0
  %35 = vmatpush.msra.mxu0 0.0
  %36 = vmatpush.msra.mxu0 0.0
  %37 = vmatpush.msra.mxu0 0.0
  %38 = vmatpush.msra.mxu0 0.0
  %39 = vmatpush.msra.mxu0 %v19
  %40 = vmatpush.msra.mxu0 %v18
  %41 = vmatpush.msra.mxu0 %v17
  %42 = vmatpush.msra.mxu0 %v16
  %43 = vmatmul.f32.gmra.mxu0 %v22
  %v44 = vpop.f32.mrf.mxu0
  %v45 = vadd.f32 0.0, %v44
  %46 = vmatmul.f32.gmra.mxu0 %v25
  %v47 = vpop.f32.mrf.mxu0
  %v48 = vadd.f32 0.0, %v47
  %49 = vdwg.mxu0
  %v50 = vld [vmem:[%s2] sm:$0xff]
  %vm51 = vcmask 64512
  %v53 = vsel %vm51, %v45, 0
  %v56 = vsel %vm51, %v48, 0
  %58 = vmatpush.msra.mxu0 0.0
  %59 = vmatpush.msra.mxu0 0.0
  %60 = vmatpush.msra.mxu0 0.0
  %61 = vmatpush.msra.mxu0 0.0
  %62 = vmatpush.msra.mxu0 0.0
  %63 = vmatpush.msra.mxu0 0.0
  %64 = vmatpush.msra.mxu0 0.0
  %65 = vmatpush.msra.mxu0 0.0
  %66 = vmatpush.msra.mxu0 0.0
  %67 = vmatpush.msra.mxu0 0.0
  %68 = vmatpush.msra.mxu0 0.0
  %69 = vmatpush.msra.mxu0 0.0
  %70 = vmatpush.msra.mxu0 0.0
  %71 = vmatpush.msra.mxu0 0.0
  %72 = vmatpush.msra.mxu0 0.0
  %73 = vmatpush.msra.mxu0 %v50
  %74 = vmatmul.f32.gmra.mxu0 %v53
  %v75 = vpop.f32.mrf.mxu0
  %v76 = vadd.f32 0.0, %v75
  %77 = vmatmul.f32.gmra.mxu0 %v56
  %v78 = vpop.f32.mrf.mxu0
  %v79 = vadd.f32 0.0, %v78
  %80 = vdwg.mxu0
  %81 = vst [vmem:[%s3] sm:$0xff] %v76
  %82 = vst [vmem:[%s3 + $0x8] sm:$0xff] %v79
  // Predicated region
  $region14: #{lora_linear.1} parent=0 // pred_check
    _
  $region15: #{lora_linear.1} parent=0 // pred_check_branch
    %84 = sbr.rel (0) target = $region17
  $region16: #{lora_linear.1} parent=0 // pred_region
    _
  $region17: #{lora_linear.1} parent=0 // pred_fallthru
    _
  // Predicated region
  $region18: #{lora_linear.1} parent=0 // pred_check
    _
  $region19: #{lora_linear.1} parent=0 // pred_check_branch
    %86 = sbr.rel (0) target = $region21
  $region20: #{lora_linear.1} parent=0 // pred_region
    _
  $region21: #{lora_linear.1} parent=0 // pred_fallthru
    _

</llo_original>
